<compile_context>
chip_gen: v7x
topology: tpu7x:2x2x1
jax: 0.10.0
libtpu: 0.0.40
codegen_flags: <defaults>
</compile_context>

<pallas_src>
import jax
import jax.numpy as jnp
from jax.experimental import pallas as pl
from jax.experimental.pallas import tpu as pltpu


def para_embed_kernel(ids_ref, len_ref, row_ref, out_ref):
    # ids_ref : SMEM (B, S) int32   (scalar prefetch; consumed by index_maps)
    # len_ref : SMEM (B,)   int32   (scalar prefetch)
    # row_ref : VMEM (1, 1, D)      gathered embedding row for (b, s)
    # out_ref : VMEM (1, 1, D) f32  resident accumulator for sentence b
    del ids_ref  # only used by the index_map
    b = pl.program_id(0)
    s = pl.program_id(1)

    @pl.when(s == 0)
    def _init():
        out_ref[...] = jnp.zeros_like(out_ref)

    @pl.when(s < len_ref[b])
    def _accumulate():
        out_ref[...] += row_ref[...].astype(jnp.float32)

    @pl.when(s == pl.num_programs(1) - 1)
    def _finalize():
        count = jnp.maximum(len_ref[b], 1).astype(jnp.float32)
        out_ref[...] = out_ref[...] * (1.0 / count)


def para_encode(token_ids, lengths, emb_table):
    """Token ids [B, S] + lengths [B] -> mean-pooled sentence embeddings [B, D]."""
    B, S = token_ids.shape
    V, D = emb_table.shape

    ids = jnp.clip(token_ids.astype(jnp.int32), 0, V - 1)   # guard OOB gathers
    lens = lengths.astype(jnp.int32)
    # Reshape so the last two block dims equal the full array dims (tile rule).
    emb3 = emb_table.reshape(V, 1, D)

    grid_spec = pltpu.PrefetchScalarGridSpec(
        num_scalar_prefetch=2,
        grid=(B, S),
        in_specs=[
            # Gather exactly one (1, 1, D) embedding row per (b, s) grid step;
            # the row index comes from the prefetched token-id table.
            pl.BlockSpec((1, 1, D),
                         lambda b, s, ids_ref, len_ref: (ids_ref[b, s], 0, 0)),
        ],
        out_specs=pl.BlockSpec((1, 1, D),
                               lambda b, s, ids_ref, len_ref: (b, 0, 0)),
    )

    out = pl.pallas_call(
        para_embed_kernel,
        out_shape=jax.ShapeDtypeStruct((B, 1, D), jnp.float32),
        grid_spec=grid_spec,
        compiler_params=pltpu.CompilerParams(
            dimension_semantics=("parallel", "arbitrary")),
    )(ids, lens, emb3)
    return out.reshape(B, D)


if __name__ == "__main__":
    # TODO(synk): Moses/sentencepiece tokenization and checkpoint loading are
    # string/IO operations with no Pallas equivalent; token ids are synthetic.
    B, S = 2, 8          # batch of "sentences", max tokens per sentence
    V, D = 128, 1024     # synthetic vocab size, emb_dim = 1024 (as in module)

    key = jax.random.PRNGKey(0)
    k_emb, k_ids, k_len = jax.random.split(key, 3)

    emb_table = (jax.random.normal(k_emb, (V, D), dtype=jnp.float32)
                 * 0.02).astype(jnp.bfloat16)
    token_ids = jax.random.randint(k_ids, (B, S), 0, V, dtype=jnp.int32)
    lengths = jax.random.randint(k_len, (B,), 3, S + 1, dtype=jnp.int32)

    out = jax.block_until_ready(para_encode(token_ids, lengths, emb_table))

    # Pure-JAX reference: embedding lookup + masked mean pooling (f32 accum).
    mask = (jnp.arange(S, dtype=jnp.int32)[None, :]
            < lengths[:, None]).astype(jnp.float32)
    ref_tok = emb_table[token_ids].astype(jnp.float32)           # (B, S, D)
    ref = (ref_tok * mask[:, :, None]).sum(axis=1) / jnp.maximum(
        mask.sum(axis=1, keepdims=True), 1.0)

    assert out.shape == (B, D) and out.dtype == jnp.float32
    assert jnp.allclose(out, ref, atol=1e-5, rtol=1e-5)
    print("KERNEL_OK")
</pallas_src>

<mosaic_0001>
module attributes {stable_mosaic.version = 11 : i64} {
  func.func @para_embed_kernel(%arg0: i32, %arg1: i32, %arg2: memref<2x8xi32, #tpu.memory_space<smem>>, %arg3: memref<2xi32, #tpu.memory_space<smem>>, %arg4: memref<1x1x1024xbf16, #tpu.memory_space<vmem>>, %arg5: memref<1x1x1024xf32, #tpu.memory_space<vmem>>) attributes {dimension_semantics = [#tpu.dimension_semantics<parallel>, #tpu.dimension_semantics<arbitrary>], iteration_bounds = array<i64: 2, 8>, scalar_prefetch = 2 : i64, scratch_operands = 0 : i64, tpu.core_type = #tpu.core_type<tc>, window_params = [{transform_indices = @transform_0, window_bounds = array<i64: 1, 1, 1024>}, {transform_indices = @transform_1, window_bounds = array<i64: 1, 1, 1024>}]} {
    %c0_i32 = arith.constant 0 : i32
    %0 = arith.cmpi eq, %arg1, %c0_i32 : i32
    %1 = arith.extui %0 : i1 to i32
    %c0_i32_0 = arith.constant 0 : i32
    %2 = arith.cmpi ne, %1, %c0_i32_0 : i32
    scf.if %2 {
      %cst = arith.constant 0.000000e+00 : f32
      %11 = vector.broadcast %cst : f32 to vector<1x1x1024xf32>
      %c0 = arith.constant 0 : index
      %c0_3 = arith.constant 0 : index
      %c0_4 = arith.constant 0 : index
      %12 = vector.load %arg5[%c0, %c0_3, %c0_4] : memref<1x1x1024xf32, #tpu.memory_space<vmem>>, vector<1x1x1024xf32>
      tpu.vector_store %arg5[%c0, %c0_3, %c0_4], %11 {strides = array<i32>} : memref<1x1x1024xf32, #tpu.memory_space<vmem>>, vector<1x1x1024xf32>,
    } else {
    }
    %3 = arith.index_cast %arg0 : i32 to index
    %4 = memref.load %arg3[%3] : memref<2xi32, #tpu.memory_space<smem>>
    %5 = arith.cmpi slt, %arg1, %4 : i32
    %6 = arith.extui %5 : i1 to i32
    %c0_i32_1 = arith.constant 0 : i32
    %7 = arith.cmpi ne, %6, %c0_i32_1 : i32
    scf.if %7 {
      %c0 = arith.constant 0 : index
      %c0_3 = arith.constant 0 : index
      %c0_4 = arith.constant 0 : index
      %11 = vector.load %arg5[%c0, %c0_3, %c0_4] : memref<1x1x1024xf32, #tpu.memory_space<vmem>>, vector<1x1x1024xf32>
      %c0_5 = arith.constant 0 : index
      %c0_6 = arith.constant 0 : index
      %c0_7 = arith.constant 0 : index
      %12 = vector.load %arg4[%c0_5, %c0_6, %c0_7] : memref<1x1x1024xbf16, #tpu.memory_space<vmem>>, vector<1x1x1024xbf16>
      %13 = arith.extf %12 : vector<1x1x1024xbf16> to vector<1x1x1024xf32>
      %14 = arith.addf %11, %13 : vector<1x1x1024xf32>
      %c0_8 = arith.constant 0 : index
      %c0_9 = arith.constant 0 : index
      %c0_10 = arith.constant 0 : index
      %15 = vector.load %arg5[%c0_8, %c0_9, %c0_10] : memref<1x1x1024xf32, #tpu.memory_space<vmem>>, vector<1x1x1024xf32>
      tpu.vector_store %arg5[%c0_8, %c0_9, %c0_10], %14 {strides = array<i32>} : memref<1x1x1024xf32, #tpu.memory_space<vmem>>, vector<1x1x1024xf32>,
    } else {
    }
    %c7_i32 = arith.constant 7 : i32
    %8 = arith.cmpi eq, %arg1, %c7_i32 : i32
    %9 = arith.extui %8 : i1 to i32
    %c0_i32_2 = arith.constant 0 : i32
    %10 = arith.cmpi ne, %9, %c0_i32_2 : i32
    scf.if %10 {
      %11 = arith.index_cast %arg0 : i32 to index
      %12 = memref.load %arg3[%11] : memref<2xi32, #tpu.memory_space<smem>>
      %c1_i32 = arith.constant 1 : i32
      %13 = arith.maxsi %12, %c1_i32 : i32
      %14 = arith.sitofp %13 : i32 to f32
      %c0 = arith.constant 0 : index
      %c0_3 = arith.constant 0 : index
      %c0_4 = arith.constant 0 : index
      %15 = vector.load %arg5[%c0, %c0_3, %c0_4] : memref<1x1x1024xf32, #tpu.memory_space<vmem>>, vector<1x1x1024xf32>
      %cst = arith.constant 1.000000e+00 : f32
      %16 = arith.divf %cst, %14 : f32
      %17 = vector.broadcast %16 : f32 to vector<1x1x1024xf32>
      %18 = arith.mulf %15, %17 : vector<1x1x1024xf32>
      %c0_5 = arith.constant 0 : index
      %c0_6 = arith.constant 0 : index
      %c0_7 = arith.constant 0 : index
      %19 = vector.load %arg5[%c0_5, %c0_6, %c0_7] : memref<1x1x1024xf32, #tpu.memory_space<vmem>>, vector<1x1x1024xf32>
      tpu.vector_store %arg5[%c0_5, %c0_6, %c0_7], %18 {strides = array<i32>} : memref<1x1x1024xf32, #tpu.memory_space<vmem>>, vector<1x1x1024xf32>,
    } else {
    }
    return
  }
  func.func @transform_0(%arg0: i32, %arg1: i32, %arg2: memref<2x8xi32, #tpu.memory_space<smem>>, %arg3: memref<2xi32, #tpu.memory_space<smem>>) -> (i32, i32, i32) {
    %0 = arith.index_cast %arg0 : i32 to index
    %1 = arith.index_cast %arg1 : i32 to index
    %2 = memref.load %arg2[%0, %1] : memref<2x8xi32, #tpu.memory_space<smem>>
    %c0_i32 = arith.constant 0 : i32
    %c0_i32_0 = arith.constant 0 : i32
    %c0_i32_1 = arith.constant 0 : i32
    return %2, %c0_i32, %c0_i32_0 : i32, i32, i32
  }
  func.func @transform_1(%arg0: i32, %arg1: i32, %arg2: memref<2x8xi32, #tpu.memory_space<smem>>, %arg3: memref<2xi32, #tpu.memory_space<smem>>) -> (i32, i32, i32) {
    %c0_i32 = arith.constant 0 : i32
    %c0_i32_0 = arith.constant 0 : i32
    %c0_i32_1 = arith.constant 0 : i32
    return %arg0, %c0_i32, %c0_i32_0 : i32, i32, i32
  }
}

</mosaic_0001>

<llo_original>
// kernel: tpu_custom_call.1
$region0: #{tpu_custom_call.1}
  #allocation0 [shape = 'u32[]', space=smem, size = 0x4, offset = 0x4, fixed_abs, tag = 'smem constant byte address 0x4 - core index']
  #allocation1 [shape = 'u32[144,128]{1,0:T(1,128)}', space=vmem, size = 0x12000, scoped, tag = 'internal scratch']
  #allocation2 [shape = 's32[1]{0}', space=sflag, size = 0x4, scoped, tag = 'scoped memory for tpu_custom_call.1']
  #allocation3 [shape = 'u8[1024]{0}', space=smem, size = 0x400, scoped, tag = 'prefetched SMEM operand 0']
  #allocation4 [shape = 'u8[512]{0}', space=smem, size = 0x200, scoped, tag = 'prefetched SMEM operand 1']
  %s0 = inlined_call_operand.vmem [shape: s32[2,8], index: 0, kind: input, shape index: {}]
  %s1 = inlined_call_operand.vmem [shape: s32[2], index: 1, kind: input, shape index: {}]
  %s2 = inlined_call_operand.vmem [shape: bf16[128,1,1024], index: 2, kind: input, shape index: {}]
  %s3 = inlined_call_operand.hbm [shape: f32[2,1,1024], index: 3, kind: output, shape index: {}]
  %s4 = sld [smem:[#allocation0]]
  $region49: #{tpu_custom_call.1} parent=0
    _
  %s6 = ssub.s32 1, %s4
  %s7 = scalar_select 0, %s6, %s4
  %s8 = sshll.u32 %s0, 4
  %s9 = int_to_ptr.vmem [resolvable:$true] %s8
  %11 = dma.vmem_to_smem %s9, 32, [#allocation3], [#allocation2]
  %s12 = sshll.u32 %s1, 4
  %s13 = int_to_ptr.vmem [resolvable:$true] %s12
  %15 = dma.vmem_to_smem %s13, 16, [#allocation4], [#allocation2]
  %16 = dma.done [#allocation2], 48
  %17 = sfence
  $region1: #{tpu_custom_call.1} parent=0
    #allocation5 [shape = 'u8[8192]{0}', space=vmem, size = 0x2000, scoped, tag = 'output window, operand 0']
    #allocation6 [shape = 's32[2]{0}', space=sflag, size = 0x8, scoped, tag = 'scoped memory for tpu_custom_call.1']
    %18 = vsyncpa [#allocation6], 0
    %s19 = scalar_lea.sflag [#allocation6], 1
    %20 = vsyncpa %s19, 0
    loop: start=0, step=1, limit=18
    $region2: #{tpu_custom_call.1} parent=1 // loop_pre_header
      _
    $region3: #{tpu_custom_call.1} parent=1 // loop_header
      %s22 = sphi 0, %s26
      %p23 = scmp.ge.s32.totalorder %s22, 18
      %s29 = sphi 0, %s41
      %s30 = sphi 0, %s37
      %s31 = sphi 0, %s29
      %s32 = sphi 0, %s30
      %s33 = sphi 0, %s31
      %s34 = sphi 0, %s32
      %s60 = sphi 0, %s62
      %s63 = sphi 0, %s60
      %s64 = sphi 0, %s63
      %s80 = sphi 0, %s64
      %s86 = sphi 0, %s88
      %s89 = sphi 0, %s86
      %s90 = sphi 0, %s89
      %s106 = sphi 0, %s90
    $region4: #{tpu_custom_call.1} parent=1 // loop_header_branch
      %25 = sbr.rel (%p23) target = $region8
    $region5: #{tpu_custom_call.1} parent=1 // loop_body
      %s27 = ssub.s32 %s22, 1
      %s28 = ssub.s32 %s22, 2
      %s35 = sadd.s32 1, %s30
      %p36 = scmp.ge.s32.totalorder %s35, 8
      %s37 = scalar_select %p36, 0, %s35
      %s38 = sadd.s32 1, %s29
      %s39 = scalar_select %p36, %s38, %s29
      %p40 = scmp.ge.s32.totalorder %s39, 2
      %s41 = scalar_select %p40, 0, %s39
      %s42 = sshra.s32 %s30, 7
      %s43 = sand.u32 %s30, 127
      %s44 = sadd.s32 %s42, %s29
      %s45 = smul.u32 %s44, 128
      %s46 = sshra.s32 %s30, 7
      %s47 = sand.u32 %s30, 127
      %s48 = sadd.s32 %s45, %s47
      %s49 = sld [smem:[#allocation3 + %s48]]
      %s50 = sshra.s32 %s37, 7
      %s51 = sand.u32 %s37, 127
      %s52 = sadd.s32 %s50, %s41
      %s53 = smul.u32 %s52, 128
      %s54 = sshra.s32 %s37, 7
      %s55 = sand.u32 %s37, 127
      %s56 = sadd.s32 %s53, %s55
      %s57 = sld [smem:[#allocation3 + %s56]]
      %s58 = ssub.s32 %s49, %s57
      %p59 = scmp.eq.s32.totalorder %s58, 0
      %s61 = sadd.s32 %s60, 1
      %s62 = scalar_select %p59, %s60, %s61
      %p65 = pneg %p59
      %p66 = scmp.eq.s32.totalorder %s22, 15
      %p67 = por %p65, %p66
      %p68 = scmp.ne.s32.totalorder %s60, %s63
      %p69 = scmp.eq.s32.totalorder %s22, 0
      %p70 = por %p68, %p69
      %p71 = scmp.ne.s32.totalorder %s60, %s63
      %p72 = scmp.eq.s32.totalorder %s27, 15
      %p73 = por %p71, %p72
      %p74 = scmp.ne.s32.totalorder %s63, %s64
      %p75 = scmp.eq.s32.totalorder %s27, 0
      %p76 = por %p74, %p75
      %p77 = scmp.ne.s32.totalorder %s63, %s64
      %p78 = scmp.eq.s32.totalorder %s28, 15
      %p79 = por %p77, %p78
      %p81 = scmp.ne.s32.totalorder %s64, %s80
      %p82 = scmp.eq.s32.totalorder %s28, 0
      %p83 = por %p81, %p82
      %s84 = ssub.s32 %s29, %s41
      %p85 = scmp.eq.s32.totalorder %s84, 0
      %s87 = sadd.s32 %s86, 1
      %s88 = scalar_select %p85, %s86, %s87
      %p91 = pneg %p85
      %p92 = scmp.eq.s32.totalorder %s22, 15
      %p93 = por %p91, %p92
      %p94 = scmp.ne.s32.totalorder %s86, %s89
      %p95 = scmp.eq.s32.totalorder %s22, 0
      %p96 = por %p94, %p95
      %p97 = scmp.ne.s32.totalorder %s86, %s89
      %p98 = scmp.eq.s32.totalorder %s27, 15
      %p99 = por %p97, %p98
      %p100 = scmp.ne.s32.totalorder %s89, %s90
      %p101 = scmp.eq.s32.totalorder %s27, 0
      %p102 = por %p100, %p101
      %p103 = scmp.ne.s32.totalorder %s89, %s90
      %p104 = scmp.eq.s32.totalorder %s28, 15
      %p105 = por %p103, %p104
      %p107 = scmp.ne.s32.totalorder %s90, %s106
      %p108 = scmp.eq.s32.totalorder %s28, 0
      %p109 = por %p107, %p108
      %p110 = scmp.le.s32.totalorder 1, %s22
      %p111 = scmp.lt.s32.totalorder %s22, 17
      %p112 = pnand %p110, %p111
      %p113 = pneg %p112
      // Predicated region
      $region9: #{tpu_custom_call.1} parent=5 // pred_check
        _
      $region10: #{tpu_custom_call.1} parent=5 // pred_check_branch
        %115 = sbr.rel (%p112) target = $region12
      $region11: #{tpu_custom_call.1} parent=5 // pred_region
        %s116 = ssub.s32 %s22, 1
      $region12: #{tpu_custom_call.1} parent=5 // pred_fallthru
        _
      %p117 = scmp.lt.s32.totalorder %s22, 16
      // Predicated region
      $region13: #{tpu_custom_call.1} parent=5 // pred_check
        %p118 = pneg %p117
      $region14: #{tpu_custom_call.1} parent=5 // pred_check_branch
        %120 = sbr.rel (%p118) target = $region16
      $region15: #{tpu_custom_call.1} parent=5 // pred_region
        // Predicated region
        $region17: #{tpu_custom_call.1} parent=15 // pred_check
          %p121 = pneg %p70
        $region18: #{tpu_custom_call.1} parent=15 // pred_check_branch
          %123 = sbr.rel (%p121) target = $region20
        $region19: #{tpu_custom_call.1} parent=15 // pred_region
          %s124 = sshra.s32 %s30, 7
          %s125 = sand.u32 %s30, 127
          %s126 = sadd.s32 %s124, %s29
          %s127 = smul.u32 %s126, 128
          %s128 = sshra.s32 %s30, 7
          %s129 = sand.u32 %s30, 127
          %s130 = sadd.s32 %s127, %s129
          %s131 = sld [smem:[#allocation3 + %s130]]
          %p132 = scmp.lt.s32.totalorder %s131, 127
          %s133 = scalar_select %p132, %s131, 127
          %s134 = smul.addr %s133, 8
          %s135 = scalar_lea.vmem %s2, %s134
          %s136 = sshra.s32 %s30, 7
          %s137 = sand.u32 %s30, 127
          %s138 = sadd.s32 %s136, %s29
          %s139 = smul.u32 %s138, 128
          %s140 = sshra.s32 %s30, 7
          %s141 = sand.u32 %s30, 127
          %s142 = sadd.s32 %s139, %s141
          %s143 = sld [smem:[#allocation3 + %s142]]
        $region20: #{tpu_custom_call.1} parent=15 // pred_fallthru
          _
      $region16: #{tpu_custom_call.1} parent=5 // pred_fallthru
        _
      %p144 = scmp.le.s32.totalorder 1, %s22
      %p145 = scmp.lt.s32.totalorder %s22, 17
      %p146 = pnand %p144, %p145
      %p147 = pneg %p146
      // Predicated region
      $region21: #{tpu_custom_call.1} parent=5 // pred_check
        _
      $region22: #{tpu_custom_call.1} parent=5 // pred_check_branch
        %149 = sbr.rel (%p146) target = $region24
      $region23: #{tpu_custom_call.1} parent=5 // pred_region
        %s150 = ssub.s32 %s22, 1
        %s151 = sshra.s32 %s32, 7
        %s152 = sand.u32 %s32, 127
        %s153 = sadd.s32 %s151, %s31
        %s154 = smul.u32 %s153, 128
        %s155 = sshra.s32 %s32, 7
        %s156 = sand.u32 %s32, 127
        %s157 = sadd.s32 %s154, %s156
        %s158 = sld [smem:[#allocation3 + %s157]]
        %p159 = scmp.lt.s32.totalorder %s158, 127
        %s160 = scalar_select %p159, %s158, 127
        %s161 = smul.addr %s160, 8
        %s162 = scalar_lea.vmem %s2, %s161
        %p163 = pneg %p76
        %p164 = pneg %p73
        %p165 = pneg %p102
        %p166 = pneg %p99
        %s167 = sand.u32 %s89, 1
        %s168 = scalar_lea.sflag [#allocation6], %s167
        %s169 = sand.u32 %s89, 1
        %s170 = smul.addr %s169, 8
        %s171 = scalar_lea.vmem [#allocation5], %s170
        %s172 = sshra.s32 %s32, 7
        %s173 = sand.u32 %s32, 127
        %s174 = sadd.s32 %s172, %s31
        %s175 = smul.u32 %s174, 128
        %s176 = sshra.s32 %s32, 7
        %s177 = sand.u32 %s32, 127
        %s178 = sadd.s32 %s175, %s177
        %s179 = sld [smem:[#allocation3 + %s178]]
        %p180 = scmp.lt.s32.totalorder %s179, 127
        %s181 = scalar_select %p180, %s179, 127
        %s182 = smul.addr %s181, 8
        %s183 = scalar_lea.vmem %s2, %s182
        %s184 = sshra.s32 %s32, 7
        %s185 = sand.u32 %s32, 127
        %s186 = sadd.s32 %s184, %s31
        %s187 = smul.u32 %s186, 128
        %s188 = sshra.s32 %s32, 7
        %s189 = sand.u32 %s32, 127
        %s190 = sadd.s32 %s187, %s189
        %s191 = sld [smem:[#allocation3 + %s190]]
        %p192 = scmp.eq.s32.totalorder %s32, 0
        // Predicated region
        $region25: #{tpu_custom_call.1} parent=23 // pred_check
          %p193 = pneg %p192
        $region26: #{tpu_custom_call.1} parent=23 // pred_check_branch
          %195 = sbr.rel (%p193) target = $region28
        $region27: #{tpu_custom_call.1} parent=23 // pred_region
          %196 = vst [vmem:[%s171] sm:$0xff] 0.0
        $region28: #{tpu_custom_call.1} parent=23 // pred_fallthru
          _
        %s197 = sld [smem:[#allocation4 + %s31]]
        %p198 = scmp.lt.s32.totalorder %s32, %s197
        // Predicated region
        $region29: #{tpu_custom_call.1} parent=23 // pred_check
          %p199 = pneg %p198
        $region30: #{tpu_custom_call.1} parent=23 // pred_check_branch
          %201 = sbr.rel (%p199) target = $region32
        $region31: #{tpu_custom_call.1} parent=23 // pred_region
          %v202 = vld [vmem:[%s171] sm:$0xff]
          %v203 = vld [vmem:[%s183] sm:$0xff]
          %v204 = vunpack.c.l.bf16 %v203
          %v205 = vunpack.c.h.bf16 %v203
          %v209 = vunpack.c.l.s4 1966171168
          %v210 = vunpack.c.0.s8 %v209
          %v211 = vlaneseq
          %v212 = vshrl.u32 %v211, 7
          %v213 = vsub.s32 %v210, %v212
          %v214 = vrot.slane %v204, %v213
          %v216 = vunpack.c.l.s4 1966171168
          %v217 = vunpack.c.0.s8 %v216
          %v218 = vlaneseq
          %v219 = vshrl.u32 %v218, 7
          %v220 = vsub.s32 %v217, %v219
          %v221 = vrot.slane %v205, %v220
          %v222 = vcombine.low %v214, %v221
          %v224 = vadd.f32 %v202, %v222
          %225 = vst [vmem:[%s171] sm:$0xff] %v224
        $region32: #{tpu_custom_call.1} parent=23 // pred_fallthru
          _
        %p226 = scmp.eq.s32.totalorder %s32, 7
        // Predicated region
        $region33: #{tpu_custom_call.1} parent=23 // pred_check
          %p227 = pneg %p226
        $region34: #{tpu_custom_call.1} parent=23 // pred_check_branch
          %229 = sbr.rel (%p227) target = $region36
        $region35: #{tpu_custom_call.1} parent=23 // pred_region
          %s230 = sld [smem:[#allocation4 + %s31]]
          %p231 = scmp.gt.s32.totalorder %s230, 1
          %s232 = scalar_select %p231, %s230, 1
          %s233 = scvt.s32.f32 %s232
          %v234 = vld [vmem:[%s171] sm:$0xff]
          %v235 = vstv %s233
          %v236 = vrcp.pop %v235
          %s237 = vtos %v236
          %v238 = vstv %s237
          %v239 = vmul.f32 %v234, %v238
          %240 = vst [vmem:[%s171] sm:$0xff] %v239
        $region36: #{tpu_custom_call.1} parent=23 // pred_fallthru
          _
        %s241 = sand.u32 %s89, 1
        %s242 = scalar_lea.sflag [#allocation6], %s241
        %s243 = sand.u32 %s89, 1
        %s244 = smul.addr %s243, 8
        %s245 = scalar_lea.vmem [#allocation5], %s244
        // Predicated region
        $region37: #{tpu_custom_call.1} parent=23 // pred_check
          %p246 = pneg %p99
        $region38: #{tpu_custom_call.1} parent=23 // pred_check_branch
          %248 = sbr.rel (%p246) target = $region40
        $region39: #{tpu_custom_call.1} parent=23 // pred_region
          %s250 = ssub.s32 128, 128
          %251 = vsyncadd %s242, %s250
          %s252 = smul.addr %s31, 8
          %s253 = smul.addr %s252, 16
          %s254 = scalar_lea.hbm %s3, %s253
          %s256 = sshll.u32 %s245, 4
          %s257 = int_to_ptr.vmem [resolvable:$true] %s256
          %259 = dma.vmem_to_hbm [thread:$0]  %s257, 128, %s254, %s242
        $region40: #{tpu_custom_call.1} parent=23 // pred_fallthru
          _
      $region24: #{tpu_custom_call.1} parent=5 // pred_fallthru
        _
      %p260 = scmp.le.s32.totalorder 2, %s22
      // Predicated region
      $region41: #{tpu_custom_call.1} parent=5 // pred_check
        %p261 = pneg %p260
      $region42: #{tpu_custom_call.1} parent=5 // pred_check_branch
        %263 = sbr.rel (%p261) target = $region44
      $region43: #{tpu_custom_call.1} parent=5 // pred_region
        %s264 = ssub.s32 %s22, 2
        // Predicated region
        $region45: #{tpu_custom_call.1} parent=43 // pred_check
          %p265 = pneg %p105
        $region46: #{tpu_custom_call.1} parent=43 // pred_check_branch
          %267 = sbr.rel (%p265) target = $region48
        $region47: #{tpu_custom_call.1} parent=43 // pred_region
          %s268 = sand.u32 %s90, 1
          %s269 = scalar_lea.sflag [#allocation6], %s268
          %s270 = sand.u32 %s90, 1
          %s271 = smul.addr %s270, 8
          %s272 = scalar_lea.vmem [#allocation5], %s271
          %273 = dma.done %s269, 128
        $region48: #{tpu_custom_call.1} parent=43 // pred_fallthru
          _
      $region44: #{tpu_custom_call.1} parent=5 // pred_fallthru
        _
    $region6: #{tpu_custom_call.1} parent=1 // loop_footer
      %s26 = sadd.s32 1, %s22
    $region7: #{tpu_custom_call.1} parent=1 // loop_footer_branch
      %21 = sbr.rel target = $region3
    $region8: #{tpu_custom_call.1} parent=1 // loop_exit
      _
    %274 = vsyncpa [#allocation6], 1
    %s275 = scalar_lea.sflag [#allocation6], 1
    %276 = vsyncpa %s275, 1

</llo_original>
